<compile_context>
chip_gen: v7x
topology: tpu7x:2x2x1
jax: 0.10.0
libtpu: 0.0.40
codegen_flags: <defaults>
</compile_context>

<pallas_src>
import functools

import jax
import jax.numpy as jnp
from jax.experimental import pallas as pl
from jax.experimental.pallas import tpu as pltpu


def _round_up(x, m):
    return (x + m - 1) // m * m


def _qnet_kernel(state_ref, action_ref, w1s_ref, w1a_ref, w2_ref, w3_ref, b_ref,
                 out_ref, *, out_width):
    """Fused two-head MLP: relu -> relu -> sigmoid on one (TILE_B, .) batch tile."""
    cd = w1s_ref.dtype  # MXU compute dtype == weight dtype; accumulation stays f32.

    x_s = state_ref[...].astype(cd)
    x_a = action_ref[...].astype(cd)

    b1 = b_ref[0:1, :]                 # (1, 2H_pad) f32
    b2 = b_ref[1:2, :]                 # (1, 2H_pad) f32
    b3 = b_ref[2:3, 0:out_width]       # (1, out_width) f32

    # layer 1: xu @ [w1|w4] == state @ W_top + action @ W_bot  (no concat needed)
    h = (jnp.dot(x_s, w1s_ref[...], preferred_element_type=jnp.float32)
         + jnp.dot(x_a, w1a_ref[...], preferred_element_type=jnp.float32)
         + b1)
    h = jnp.maximum(h, 0.0)

    # layer 2: block-diagonal keeps the two heads independent.
    h = jnp.dot(h.astype(cd), w2_ref[...], preferred_element_type=jnp.float32) + b2
    h = jnp.maximum(h, 0.0)

    # layer 3 + sigmoid; padded lanes (cols >= 2) are sliced off in the wrapper.
    z = jnp.dot(h.astype(cd), w3_ref[...], preferred_element_type=jnp.float32) + b3
    out_ref[...] = jax.nn.sigmoid(z)


@functools.partial(jax.jit, static_argnames=("tile_b",))
def qnetwork_constraint_forward(state, action, packed_params, *, tile_b=512):
    """state: (B, num_inputs), action: (B, num_actions) -> (q1, q2), each (B, 1) f32."""
    w1s, w1a, w2f, w3f, bpack = packed_params
    B = state.shape[0]
    d_s = w1s.shape[0]
    d_a = w1a.shape[0]
    h2p = w2f.shape[0]
    ow = w3f.shape[1]

    # Batch tile: multiple of 8 (f32 sublane), capped at tile_b.
    tb = min(_round_up(B, 8), _round_up(tile_b, 8))
    b_pad = _round_up(B, tb)
    state = state.astype(jnp.float32)
    action = action.astype(jnp.float32)
    if b_pad != B:
        state = jnp.pad(state, ((0, b_pad - B), (0, 0)))
        action = jnp.pad(action, ((0, b_pad - B), (0, 0)))

    grid = (b_pad // tb,)

    wbytes = (w1s.size + w1a.size + w2f.size + w3f.size) * w1s.dtype.itemsize
    bytes_accessed = (b_pad * (d_s + d_a) * 4      # activations in
                      + wbytes + bpack.size * 4    # weights + packed biases
                      + b_pad * ow * 4)            # output slab
    flops = 2 * b_pad * ((d_s + d_a) * h2p + h2p * h2p + h2p * ow)

    out = pl.pallas_call(
        functools.partial(_qnet_kernel, out_width=ow),
        out_shape=jax.ShapeDtypeStruct((b_pad, ow), jnp.float32),
        grid=grid,
        in_specs=[
            pl.BlockSpec((tb, d_s), lambda i: (i, 0)),     # state tile
            pl.BlockSpec((tb, d_a), lambda i: (i, 0)),     # action tile
            pl.BlockSpec((d_s, h2p), lambda i: (0, 0)),    # fused layer-1 (state rows)
            pl.BlockSpec((d_a, h2p), lambda i: (0, 0)),    # fused layer-1 (action rows)
            pl.BlockSpec((h2p, h2p), lambda i: (0, 0)),    # block-diagonal layer-2
            pl.BlockSpec((h2p, ow), lambda i: (0, 0)),     # fused, lane-padded layer-3
            pl.BlockSpec((3, h2p), lambda i: (0, 0)),      # packed biases
        ],
        out_specs=pl.BlockSpec((tb, ow), lambda i: (i, 0)),
        compiler_params=pltpu.CompilerParams(
            dimension_semantics=("parallel",)),
        cost_estimate=pl.CostEstimate(
            flops=flops,
            transcendentals=b_pad * ow,
            bytes_accessed=bytes_accessed),
    )(state, action, w1s, w1a, w2f, w3f, bpack)

    q1 = out[:B, 0:1]
    q2 = out[:B, 1:2]
    return q1, q2


def _xavier_uniform(key, fan_in, fan_out):
    bound = float(jnp.sqrt(6.0 / (fan_in + fan_out)))
    return jax.random.uniform(key, (fan_in, fan_out), jnp.float32,
                              minval=-bound, maxval=bound)


def init_params(key, num_inputs, num_actions, hidden_dim):
    """Raw per-layer params matching the PyTorch module (weights stored as (in, out))."""
    d_in = num_inputs + num_actions
    ks = jax.random.split(key, 6)
    w1 = _xavier_uniform(ks[0], d_in, hidden_dim)
    w2 = _xavier_uniform(ks[1], hidden_dim, hidden_dim)
    w3 = _xavier_uniform(ks[2], hidden_dim, 1)
    w4 = _xavier_uniform(ks[3], d_in, hidden_dim)
    w5 = _xavier_uniform(ks[4], hidden_dim, hidden_dim)
    w6 = _xavier_uniform(ks[5], hidden_dim, 1)
    zeros = lambda n: jnp.zeros((1, n), jnp.float32)  # bias init 0, as in weights_init_
    return (w1, zeros(hidden_dim), w2, zeros(hidden_dim), w3, zeros(1),
            w4, zeros(hidden_dim), w5, zeros(hidden_dim), w6, zeros(1))


def pack_params(params, num_inputs, num_actions, hidden_dim,
                compute_dtype=jnp.float32, out_width=128):
    """One-time fusion/padding of the two heads into a single padded weight set."""
    (w1, b1, w2, b2, w3, b3, w4, b4, w5, b5, w6, b6) = params
    H = hidden_dim
    H2 = 2 * H
    h2p = _round_up(max(H2, 128), 128)          # lane-aligned fused hidden width
    d_in = num_inputs + num_actions

    w1f = jnp.zeros((d_in, h2p), jnp.float32).at[:, :H].set(w1).at[:, H:H2].set(w4)
    w2f = jnp.zeros((h2p, h2p), jnp.float32).at[:H, :H].set(w2).at[H:H2, H:H2].set(w5)
    w3f = (jnp.zeros((h2p, out_width), jnp.float32)
           .at[:H, 0:1].set(w3).at[H:H2, 1:2].set(w6))

    bpack = jnp.zeros((3, h2p), jnp.float32)
    bpack = bpack.at[0, :H].set(b1[0]).at[0, H:H2].set(b4[0])
    bpack = bpack.at[1, :H].set(b2[0]).at[1, H:H2].set(b5[0])
    bpack = bpack.at[2, 0].set(b3[0, 0]).at[2, 1].set(b6[0, 0])

    return (w1f[:num_inputs].astype(compute_dtype),   # layer-1, state rows
            w1f[num_inputs:].astype(compute_dtype),   # layer-1, action rows
            w2f.astype(compute_dtype),
            w3f.astype(compute_dtype),
            bpack)                                    # biases stay f32


def _reference_forward(state, action, params):
    """Pure-JAX reference of the PyTorch forward for correctness checking."""
    (w1, b1, w2, b2, w3, b3, w4, b4, w5, b5, w6, b6) = params
    hp = jax.lax.Precision.HIGHEST
    xu = jnp.concatenate([state, action], axis=1).astype(jnp.float32)
    x1 = jax.nn.relu(jnp.dot(xu, w1, precision=hp) + b1)
    x1 = jax.nn.relu(jnp.dot(x1, w2, precision=hp) + b2)
    x1 = jax.nn.sigmoid(jnp.dot(x1, w3, precision=hp) + b3)
    x2 = jax.nn.relu(jnp.dot(xu, w4, precision=hp) + b4)
    x2 = jax.nn.relu(jnp.dot(x2, w5, precision=hp) + b5)
    x2 = jax.nn.sigmoid(jnp.dot(x2, w6, precision=hp) + b6)
    return x1, x2


if __name__ == "__main__":
    num_inputs, num_actions, hidden_dim = 12, 4, 32

    key = jax.random.PRNGKey(0)
    k_state, k_action, k_params = jax.random.split(key, 3)

    raw_params = init_params(k_params, num_inputs, num_actions, hidden_dim)
    packed = pack_params(raw_params, num_inputs, num_actions, hidden_dim)

    # Small batch: single grid step.
    B = 8
    state = jax.random.normal(k_state, (B, num_inputs), dtype=jnp.float32)
    action = jax.random.normal(k_action, (B, num_actions), dtype=jnp.float32)
    q1, q2 = qnetwork_constraint_forward(state, action, packed)
    jax.block_until_ready((q1, q2))
    r1, r2 = _reference_forward(state, action, raw_params)
    assert q1.shape == (B, 1) and q2.shape == (B, 1)
    assert jnp.allclose(q1, r1, atol=1e-4), "q1 mismatch vs reference (B=8)"
    assert jnp.allclose(q2, r2, atol=1e-4), "q2 mismatch vs reference (B=8)"

    # Larger, non-aligned batch: exercises the batch grid + padding path.
    B2 = 300
    state2 = jax.random.normal(jax.random.PRNGKey(1), (B2, num_inputs), dtype=jnp.float32)
    action2 = jax.random.normal(jax.random.PRNGKey(2), (B2, num_actions), dtype=jnp.float32)
    p1, p2 = qnetwork_constraint_forward(state2, action2, packed, tile_b=128)
    jax.block_until_ready((p1, p2))
    s1, s2 = _reference_forward(state2, action2, raw_params)
    assert p1.shape == (B2, 1) and p2.shape == (B2, 1)
    assert jnp.allclose(p1, s1, atol=1e-4), "q1 mismatch vs reference (B=300)"
    assert jnp.allclose(p2, s2, atol=1e-4), "q2 mismatch vs reference (B=300)"

    print("KERNEL_OK")
</pallas_src>

<mosaic_0001>
module attributes {stable_mosaic.version = 11 : i64} {
  func.func @_qnet_kernel(%arg0: i32, %arg1: memref<8x12xf32, #tpu.memory_space<vmem>>, %arg2: memref<8x4xf32, #tpu.memory_space<vmem>>, %arg3: memref<12x128xf32, #tpu.memory_space<vmem>>, %arg4: memref<4x128xf32, #tpu.memory_space<vmem>>, %arg5: memref<128x128xf32, #tpu.memory_space<vmem>>, %arg6: memref<128x128xf32, #tpu.memory_space<vmem>>, %arg7: memref<3x128xf32, #tpu.memory_space<vmem>>, %arg8: memref<8x128xf32, #tpu.memory_space<vmem>>) attributes {dimension_semantics = [#tpu.dimension_semantics<parallel>], iteration_bounds = array<i64: 1>, scalar_prefetch = 0 : i64, scratch_operands = 0 : i64, tpu.core_type = #tpu.core_type<tc>, window_params = [{transform_indices = @transform_0, window_bounds = array<i64: 8, 12>}, {transform_indices = @transform_1, window_bounds = array<i64: 8, 4>}, {pipeline_mode = #tpu.pipeline_mode<synchronous>, transform_indices = @transform_2, window_bounds = array<i64: 12, 128>}, {pipeline_mode = #tpu.pipeline_mode<synchronous>, transform_indices = @transform_3, window_bounds = array<i64: 4, 128>}, {pipeline_mode = #tpu.pipeline_mode<synchronous>, transform_indices = @transform_4, window_bounds = array<i64: 128, 128>}, {pipeline_mode = #tpu.pipeline_mode<synchronous>, transform_indices = @transform_5, window_bounds = array<i64: 128, 128>}, {pipeline_mode = #tpu.pipeline_mode<synchronous>, transform_indices = @transform_6, window_bounds = array<i64: 3, 128>}, {transform_indices = @transform_7, window_bounds = array<i64: 8, 128>}]} {
    %c0 = arith.constant 0 : index
    %c0_0 = arith.constant 0 : index
    %0 = vector.load %arg1[%c0, %c0_0] : memref<8x12xf32, #tpu.memory_space<vmem>>, vector<8x12xf32>
    %c0_1 = arith.constant 0 : index
    %c0_2 = arith.constant 0 : index
    %1 = vector.load %arg2[%c0_1, %c0_2] : memref<8x4xf32, #tpu.memory_space<vmem>>, vector<8x4xf32>
    %c0_3 = arith.constant 0 : index
    %c0_4 = arith.constant 0 : index
    %2 = vector.load %arg7[%c0_3, %c0_4] : memref<3x128xf32, #tpu.memory_space<vmem>>, vector<1x128xf32>
    %c1 = arith.constant 1 : index
    %c0_5 = arith.constant 0 : index
    %3 = vector.load %arg7[%c1, %c0_5] : memref<3x128xf32, #tpu.memory_space<vmem>>, vector<1x128xf32>
    %c2 = arith.constant 2 : index
    %c0_6 = arith.constant 0 : index
    %4 = vector.load %arg7[%c2, %c0_6] : memref<3x128xf32, #tpu.memory_space<vmem>>, vector<1x128xf32>
    %c0_7 = arith.constant 0 : index
    %c0_8 = arith.constant 0 : index
    %5 = vector.load %arg3[%c0_7, %c0_8] : memref<12x128xf32, #tpu.memory_space<vmem>>, vector<12x128xf32>
    %cst = arith.constant dense<0.000000e+00> : vector<8x128xf32>
    %6 = tpu.matmul %0, %5, %cst {dimension_numbers = #tpu.dot_dimension_numbers<[1], [0], [0], [1], [0, 0, 1, 1], [], []>} : vector<8x12xf32>, vector<12x128xf32>, vector<8x128xf32> -> vector<8x128xf32>
    %c0_9 = arith.constant 0 : index
    %c0_10 = arith.constant 0 : index
    %7 = vector.load %arg4[%c0_9, %c0_10] : memref<4x128xf32, #tpu.memory_space<vmem>>, vector<4x128xf32>
    %cst_11 = arith.constant dense<0.000000e+00> : vector<8x128xf32>
    %8 = tpu.matmul %1, %7, %cst_11 {dimension_numbers = #tpu.dot_dimension_numbers<[1], [0], [0], [1], [0, 0, 1, 1], [], []>} : vector<8x4xf32>, vector<4x128xf32>, vector<8x128xf32> -> vector<8x128xf32>
    %9 = arith.addf %6, %8 : vector<8x128xf32>
    %10 = vector.broadcast %2 : vector<1x128xf32> to vector<8x128xf32>
    %11 = arith.addf %9, %10 : vector<8x128xf32>
    %cst_12 = arith.constant 0.000000e+00 : f32
    %12 = vector.broadcast %cst_12 : f32 to vector<8x128xf32>
    %13 = arith.maximumf %11, %12 : vector<8x128xf32>
    %c0_13 = arith.constant 0 : index
    %c0_14 = arith.constant 0 : index
    %14 = vector.load %arg5[%c0_13, %c0_14] : memref<128x128xf32, #tpu.memory_space<vmem>>, vector<128x128xf32>
    %cst_15 = arith.constant dense<0.000000e+00> : vector<8x128xf32>
    %15 = tpu.matmul %13, %14, %cst_15 {dimension_numbers = #tpu.dot_dimension_numbers<[1], [0], [0], [1], [0, 0, 1, 1], [], []>} : vector<8x128xf32>, vector<128x128xf32>, vector<8x128xf32> -> vector<8x128xf32>
    %16 = vector.broadcast %3 : vector<1x128xf32> to vector<8x128xf32>
    %17 = arith.addf %15, %16 : vector<8x128xf32>
    %cst_16 = arith.constant 0.000000e+00 : f32
    %18 = vector.broadcast %cst_16 : f32 to vector<8x128xf32>
    %19 = arith.maximumf %17, %18 : vector<8x128xf32>
    %c0_17 = arith.constant 0 : index
    %c0_18 = arith.constant 0 : index
    %20 = vector.load %arg6[%c0_17, %c0_18] : memref<128x128xf32, #tpu.memory_space<vmem>>, vector<128x128xf32>
    %cst_19 = arith.constant dense<0.000000e+00> : vector<8x128xf32>
    %21 = tpu.matmul %19, %20, %cst_19 {dimension_numbers = #tpu.dot_dimension_numbers<[1], [0], [0], [1], [0, 0, 1, 1], [], []>} : vector<8x128xf32>, vector<128x128xf32>, vector<8x128xf32> -> vector<8x128xf32>
    %22 = vector.broadcast %4 : vector<1x128xf32> to vector<8x128xf32>
    %23 = arith.addf %21, %22 : vector<8x128xf32>
    %24 = arith.negf %23 : vector<8x128xf32>
    %25 = math.exp %24 : vector<8x128xf32>
    %cst_20 = arith.constant 1.000000e+00 : f32
    %26 = vector.broadcast %cst_20 : f32 to vector<8x128xf32>
    %27 = arith.addf %26, %25 : vector<8x128xf32>
    %28 = arith.divf %26, %27 : vector<8x128xf32>
    %c0_21 = arith.constant 0 : index
    %c0_22 = arith.constant 0 : index
    %29 = vector.load %arg8[%c0_21, %c0_22] : memref<8x128xf32, #tpu.memory_space<vmem>>, vector<8x128xf32>
    tpu.vector_store %arg8[%c0_21, %c0_22], %28 {strides = array<i32>} : memref<8x128xf32, #tpu.memory_space<vmem>>, vector<8x128xf32>,
    return
  }
  func.func @transform_0(%arg0: i32) -> (i32, i32) {
    %c0_i32 = arith.constant 0 : i32
    %c0_i32_0 = arith.constant 0 : i32
    return %arg0, %c0_i32 : i32, i32
  }
  func.func @transform_1(%arg0: i32) -> (i32, i32) {
    %c0_i32 = arith.constant 0 : i32
    %c0_i32_0 = arith.constant 0 : i32
    return %arg0, %c0_i32 : i32, i32
  }
  func.func @transform_2(%arg0: i32) -> (i32, i32) {
    %c0_i32 = arith.constant 0 : i32
    %c0_i32_0 = arith.constant 0 : i32
    %c0_i32_1 = arith.constant 0 : i32
    return %c0_i32, %c0_i32_0 : i32, i32
  }
  func.func @transform_3(%arg0: i32) -> (i32, i32) {
    %c0_i32 = arith.constant 0 : i32
    %c0_i32_0 = arith.constant 0 : i32
    %c0_i32_1 = arith.constant 0 : i32
    return %c0_i32, %c0_i32_0 : i32, i32
  }
  func.func @transform_4(%arg0: i32) -> (i32, i32) {
    %c0_i32 = arith.constant 0 : i32
    %c0_i32_0 = arith.constant 0 : i32
    %c0_i32_1 = arith.constant 0 : i32
    return %c0_i32, %c0_i32_0 : i32, i32
  }
  func.func @transform_5(%arg0: i32) -> (i32, i32) {
    %c0_i32 = arith.constant 0 : i32
    %c0_i32_0 = arith.constant 0 : i32
    %c0_i32_1 = arith.constant 0 : i32
    return %c0_i32, %c0_i32_0 : i32, i32
  }
  func.func @transform_6(%arg0: i32) -> (i32, i32) {
    %c0_i32 = arith.constant 0 : i32
    %c0_i32_0 = arith.constant 0 : i32
    %c0_i32_1 = arith.constant 0 : i32
    return %c0_i32, %c0_i32_0 : i32, i32
  }
  func.func @transform_7(%arg0: i32) -> (i32, i32) {
    %c0_i32 = arith.constant 0 : i32
    %c0_i32_0 = arith.constant 0 : i32
    return %arg0, %c0_i32 : i32, i32
  }
}

</mosaic_0001>

<llo_original>
// kernel: qnetwork_constraint_forward.1
$region0: #{qnetwork_constraint_forward.1}
  #allocation0 [shape = 'u32[]', space=smem, size = 0x4, offset = 0x4, fixed_abs, tag = 'smem constant byte address 0x4 - core index']
  #allocation1 [shape = 'u32[144,128]{1,0:T(1,128)}', space=vmem, size = 0x12000, scoped, tag = 'internal scratch']
  %s0 = inlined_call_operand.hbm [shape: f32[8,12], index: 0, kind: input, shape index: {}]
  %s1 = inlined_call_operand.vmem [shape: f32[8,4], index: 1, kind: input, shape index: {}]
  %s2 = inlined_call_operand.vmem [shape: f32[12,128], index: 2, kind: input, shape index: {}]
  %s3 = inlined_call_operand.vmem [shape: f32[4,128], index: 3, kind: input, shape index: {}]
  %s4 = inlined_call_operand.hbm [shape: f32[128,128], index: 4, kind: input, shape index: {}]
  %s5 = inlined_call_operand.hbm [shape: f32[128,128], index: 5, kind: input, shape index: {}]
  %s6 = inlined_call_operand.vmem [shape: f32[3,128], index: 6, kind: input, shape index: {}]
  %s7 = inlined_call_operand.vmem [shape: f32[8,128], index: 7, kind: output, shape index: {}]
  %s8 = sld [smem:[#allocation0]]
  $region50: #{qnetwork_constraint_forward.1} parent=0
    _
  %s10 = ssub.s32 1, %s8
  %s11 = scalar_select 0, %s10, %s8
  $region1: #{qnetwork_constraint_forward.1} parent=0
    #allocation2 [shape = 'u8[4096]{0}', space=vmem, size = 0x1000, scoped, tag = 'input window, operand 0, single buffered']
    #allocation3 [shape = 's32[1]{0}', space=sflag, size = 0x4, scoped, tag = 'scoped memory for qnetwork_constraint_forward.1']
    #allocation4 [shape = 'u8[65536]{0}', space=vmem, size = 0x10000, scoped, tag = 'input window, operand 4, single buffered']
    #allocation5 [shape = 's32[1]{0}', space=sflag, size = 0x4, scoped, tag = 'scoped memory for qnetwork_constraint_forward.1']
    #allocation6 [shape = 'u8[65536]{0}', space=vmem, size = 0x10000, scoped, tag = 'input window, operand 5, single buffered']
    %12 = vsyncpa [#allocation3], 0
    %13 = vsyncpa [#allocation5], 0
    // Predicated region
    $region2: #{qnetwork_constraint_forward.1} parent=1 // pred_check
      _
    $region3: #{qnetwork_constraint_forward.1} parent=1 // pred_check_branch
      %15 = sbr.rel (0) target = $region5
    $region4: #{qnetwork_constraint_forward.1} parent=1 // pred_region
      %s17 = ssub.s32 128, 128
      %18 = vsyncadd [#allocation3], %s17
      %s20 = sshll.u32 [#allocation2], 4
      %s21 = int_to_ptr.vmem [resolvable:$true] %s20
      %23 = dma.hbm_to_vmem [thread:$0]  %s0, 128, %s21, [#allocation3]
    $region5: #{qnetwork_constraint_forward.1} parent=1 // pred_fallthru
      _
    // Predicated region
    $region6: #{qnetwork_constraint_forward.1} parent=1 // pred_check
      _
    $region7: #{qnetwork_constraint_forward.1} parent=1 // pred_check_branch
      %25 = sbr.rel (0) target = $region9
    $region8: #{qnetwork_constraint_forward.1} parent=1 // pred_region
      _
    $region9: #{qnetwork_constraint_forward.1} parent=1 // pred_fallthru
      _
    // Predicated region
    $region10: #{qnetwork_constraint_forward.1} parent=1 // pred_check
      _
    $region11: #{qnetwork_constraint_forward.1} parent=1 // pred_check_branch
      %27 = sbr.rel (0) target = $region13
    $region12: #{qnetwork_constraint_forward.1} parent=1 // pred_region
      _
    $region13: #{qnetwork_constraint_forward.1} parent=1 // pred_fallthru
      _
    // Predicated region
    $region14: #{qnetwork_constraint_forward.1} parent=1 // pred_check
      _
    $region15: #{qnetwork_constraint_forward.1} parent=1 // pred_check_branch
      %29 = sbr.rel (0) target = $region17
    $region16: #{qnetwork_constraint_forward.1} parent=1 // pred_region
      _
    $region17: #{qnetwork_constraint_forward.1} parent=1 // pred_fallthru
      _
    // Predicated region
    $region18: #{qnetwork_constraint_forward.1} parent=1 // pred_check
      _
    $region19: #{qnetwork_constraint_forward.1} parent=1 // pred_check_branch
      %31 = sbr.rel (0) target = $region21
    $region20: #{qnetwork_constraint_forward.1} parent=1 // pred_region
      %s33 = ssub.s32 2048, 2048
      %34 = vsyncadd [#allocation5], %s33
      %s35 = sshll.u32 [#allocation4], 4
      %s36 = int_to_ptr.vmem [resolvable:$true] %s35
      %41 = dma.hbm_to_vmem [thread:$0]  %s4, 2048, %s36, [#allocation5], 128, 128, 8
    $region21: #{qnetwork_constraint_forward.1} parent=1 // pred_fallthru
      _
    // Predicated region
    $region22: #{qnetwork_constraint_forward.1} parent=1 // pred_check
      _
    $region23: #{qnetwork_constraint_forward.1} parent=1 // pred_check_branch
      %43 = sbr.rel (0) target = $region25
    $region24: #{qnetwork_constraint_forward.1} parent=1 // pred_region
      %s45 = ssub.s32 2048, 2048
      %46 = vsyncadd [#allocation5], %s45
      %s47 = sshll.u32 [#allocation6], 4
      %s48 = int_to_ptr.vmem [resolvable:$true] %s47
      %53 = dma.hbm_to_vmem [thread:$0]  %s5, 2048, %s48, [#allocation5], 128, 128, 8
    $region25: #{qnetwork_constraint_forward.1} parent=1 // pred_fallthru
      _
    // Predicated region
    $region26: #{qnetwork_constraint_forward.1} parent=1 // pred_check
      _
    $region27: #{qnetwork_constraint_forward.1} parent=1 // pred_check_branch
      %55 = sbr.rel (0) target = $region29
    $region28: #{qnetwork_constraint_forward.1} parent=1 // pred_region
      _
    $region29: #{qnetwork_constraint_forward.1} parent=1 // pred_fallthru
      _
    // Predicated region
    $region30: #{qnetwork_constraint_forward.1} parent=1 // pred_check
      _
    $region31: #{qnetwork_constraint_forward.1} parent=1 // pred_check_branch
      %57 = sbr.rel (0) target = $region33
    $region32: #{qnetwork_constraint_forward.1} parent=1 // pred_region
      %58 = dma.done [#allocation3], 128
    $region33: #{qnetwork_constraint_forward.1} parent=1 // pred_fallthru
      _
    // Predicated region
    $region34: #{qnetwork_constraint_forward.1} parent=1 // pred_check
      _
    $region35: #{qnetwork_constraint_forward.1} parent=1 // pred_check_branch
      %60 = sbr.rel (0) target = $region37
    $region36: #{qnetwork_constraint_forward.1} parent=1 // pred_region
      %61 = dma.done [#allocation5], 2048
    $region37: #{qnetwork_constraint_forward.1} parent=1 // pred_fallthru
      _
    // Predicated region
    $region38: #{qnetwork_constraint_forward.1} parent=1 // pred_check
      _
    $region39: #{qnetwork_constraint_forward.1} parent=1 // pred_check_branch
      %63 = sbr.rel (0) target = $region41
    $region40: #{qnetwork_constraint_forward.1} parent=1 // pred_region
      %64 = dma.done [#allocation5], 2048
    $region41: #{qnetwork_constraint_forward.1} parent=1 // pred_fallthru
      _
    %v65 = vld [vmem:[#allocation2] sm:$0xff]
    %v66 = vld [vmem:[%s1] sm:$0xff]
    %v67 = vld [vmem:[%s6] sm:$0x1]
    %v68 = vld [vmem:[%s6 + $0x1] sm:$0x1]
    %v69 = vld [vmem:[%s6 + $0x2] sm:$0x1]
    %v70 = vld [vmem:[%s2] sm:$0xff]
    %v71 = vld [vmem:[%s2 + $0x8] sm:$0xf]
    %v72 = vld [vmem:[%s3] sm:$0xf]
    %vm73 = vcmask 31744
    %v75 = vsel %vm73, %v66, 0
    %vm77 = vcmask 1043456
    %v79 = vsel %vm77, %v72, 0
    %81 = vmatprep.subr.mxu0 0.0
    %82 = vmatpush1.msra.mxu0 %v79
    %83 = vmatprep.subr.mxu0 0.0
    %84 = vmatpush1.msra.mxu0 0.0
    %85 = vmatprep.subr.mxu0 0.0
    %86 = vmatpush1.msra.mxu0 0.0
    %87 = vmatprep.subr.mxu0 0.0
    %88 = vmatpush1.msra.mxu0 0.0
    %89 = vmatprep.subr.mxu0 0.0
    %90 = vmatpush1.msra.mxu0 0.0
    %91 = vmatprep.subr.mxu0 0.0
    %92 = vmatpush1.msra.mxu0 0.0
    %93 = vmatprep.subr.mxu0 0.0
    %94 = vmatpush1.msra.mxu0 0.0
    %95 = vmatprep.subr.mxu0 0.0
    %96 = vmatpush1.msra.mxu0 0.0
    %97 = vmatprep.subr.mxu0 0.0
    %98 = vmatpush1.msra.mxu0 0.0
    %99 = vmatprep.subr.mxu0 0.0
    %100 = vmatpush1.msra.mxu0 0.0
    %101 = vmatprep.subr.mxu0 0.0
    %102 = vmatpush1.msra.mxu0 0.0
    %103 = vmatprep.subr.mxu0 0.0
    %104 = vmatpush1.msra.mxu0 0.0
    %105 = vmatprep.subr.mxu0 0.0
    %106 = vmatpush1.msra.mxu0 0.0
    %107 = vmatprep.subr.mxu0 0.0
    %108 = vmatpush1.msra.mxu0 0.0
    %109 = vmatprep.subr.mxu0 0.0
    %110 = vmatpush1.msra.mxu0 0.0
    %111 = vmatprep.subr.mxu0 0.0
    %112 = vmatpush1.msra.mxu0 0.0
    %113 = vmatprep.subr.mxu0 0.0
    %114 = vmatpush1.msra.mxu0 0.0
    %115 = vmatprep.subr.mxu0 0.0
    %116 = vmatpush1.msra.mxu0 0.0
    %117 = vmatprep.subr.mxu0 0.0
    %118 = vmatpush1.msra.mxu0 0.0
    %119 = vmatprep.subr.mxu0 0.0
    %120 = vmatpush1.msra.mxu0 0.0
    %121 = vmatprep.subr.mxu0 0.0
    %122 = vmatpush1.msra.mxu0 0.0
    %123 = vmatprep.subr.mxu0 0.0
    %124 = vmatpush1.msra.mxu0 0.0
    %125 = vmatprep.subr.mxu0 0.0
    %126 = vmatpush1.msra.mxu0 0.0
    %127 = vmatprep.subr.mxu0 0.0
    %128 = vmatpush1.msra.mxu0 0.0
    %129 = vmatprep.subr.mxu0 0.0
    %130 = vmatpush1.msra.mxu0 0.0
    %131 = vmatprep.subr.mxu0 0.0
    %132 = vmatpush1.msra.mxu0 0.0
    %133 = vmatprep.subr.mxu0 0.0
    %134 = vmatpush1.msra.mxu0 0.0
    %135 = vmatprep.subr.mxu0 0.0
    %136 = vmatpush1.msra.mxu0 0.0
    %137 = vmatprep.subr.mxu0 0.0
    %138 = vmatpush1.msra.mxu0 0.0
    %139 = vmatprep.subr.mxu0 0.0
    %140 = vmatpush1.msra.mxu0 0.0
    %141 = vmatprep.subr.mxu0 0.0
    %142 = vmatpush1.msra.mxu0 0.0
    %143 = vmatprep.subr.mxu0 0.0
    %144 = vmatpush1.msra.mxu0 0.0
    %145 = vmatprep.mubr.f32.mxu0 0.0
    %146 = vmatmul.mubr.f32.gmra.mrb[0].mxu0 %v75
    %v147 = vpop.f32.mrb[0].mxu0
    %v148 = vadd.f32 0.0, %v147
    %v149 = vpop.f32.mrb[0].mxu0
    %150 = vdwg.mxu0
    %vm151 = vcmask 97280
    %v153 = vsel %vm151, %v65, 0
    %v156 = vsel %vm77, %v71, 0
    %158 = vmatprep.subr.mxu0 0.0
    %159 = vmatpush1.msra.mxu0 %v70
    %160 = vmatprep.subr.mxu0 0.0
    %161 = vmatpush1.msra.mxu0 %v156
    %162 = vmatprep.subr.mxu0 0.0
    %163 = vmatpush1.msra.mxu0 0.0
    %164 = vmatprep.subr.mxu0 0.0
    %165 = vmatpush1.msra.mxu0 0.0
    %166 = vmatprep.subr.mxu0 0.0
    %167 = vmatpush1.msra.mxu0 0.0
    %168 = vmatprep.subr.mxu0 0.0
    %169 = vmatpush1.msra.mxu0 0.0
    %170 = vmatprep.subr.mxu0 0.0
    %171 = vmatpush1.msra.mxu0 0.0
    %172 = vmatprep.subr.mxu0 0.0
    %173 = vmatpush1.msra.mxu0 0.0
    %174 = vmatprep.subr.mxu0 0.0
    %175 = vmatpush1.msra.mxu0 0.0
    %176 = vmatprep.subr.mxu0 0.0
    %177 = vmatpush1.msra.mxu0 0.0
    %178 = vmatprep.subr.mxu0 0.0
    %179 = vmatpush1.msra.mxu0 0.0
    %180 = vmatprep.subr.mxu0 0.0
    %181 = vmatpush1.msra.mxu0 0.0
    %182 = vmatprep.subr.mxu0 0.0
    %183 = vmatpush1.msra.mxu0 0.0
    %184 = vmatprep.subr.mxu0 0.0
    %185 = vmatpush1.msra.mxu0 0.0
    %186 = vmatprep.subr.mxu0 0.0
    %187 = vmatpush1.msra.mxu0 0.0
    %188 = vmatprep.subr.mxu0 0.0
    %189 = vmatpush1.msra.mxu0 0.0
    %190 = vmatprep.subr.mxu0 0.0
    %191 = vmatpush1.msra.mxu0 0.0
    %192 = vmatprep.subr.mxu0 0.0
    %193 = vmatpush1.msra.mxu0 0.0
    %194 = vmatprep.subr.mxu0 0.0
    %195 = vmatpush1.msra.mxu0 0.0
    %196 = vmatprep.subr.mxu0 0.0
    %197 = vmatpush1.msra.mxu0 0.0
    %198 = vmatprep.subr.mxu0 0.0
    %199 = vmatpush1.msra.mxu0 0.0
    %200 = vmatprep.subr.mxu0 0.0
    %201 = vmatpush1.msra.mxu0 0.0
    %202 = vmatprep.subr.mxu0 0.0
    %203 = vmatpush1.msra.mxu0 0.0
    %204 = vmatprep.subr.mxu0 0.0
    %205 = vmatpush1.msra.mxu0 0.0
    %206 = vmatprep.subr.mxu0 0.0
    %207 = vmatpush1.msra.mxu0 0.0
    %208 = vmatprep.subr.mxu0 0.0
    %209 = vmatpush1.msra.mxu0 0.0
    %210 = vmatprep.subr.mxu0 0.0
    %211 = vmatpush1.msra.mxu0 0.0
    %212 = vmatprep.subr.mxu0 0.0
    %213 = vmatpush1.msra.mxu0 0.0
    %214 = vmatprep.subr.mxu0 0.0
    %215 = vmatpush1.msra.mxu0 0.0
    %216 = vmatprep.subr.mxu0 0.0
    %217 = vmatpush1.msra.mxu0 0.0
    %218 = vmatprep.subr.mxu0 0.0
    %219 = vmatpush1.msra.mxu0 0.0
    %220 = vmatprep.subr.mxu0 0.0
    %221 = vmatpush1.msra.mxu0 0.0
    %222 = vmatprep.mubr.f32.mxu0 0.0
    %223 = vmatmul.mubr.f32.gmra.mrb[0].mxu0 %v153
    %v224 = vpop.f32.mrb[0].mxu0
    %v225 = vadd.f32 %v148, %v224
    %v226 = vpop.f32.mrb[0].mxu0
    %227 = vdwg.mxu0
    %v228 = vlaneseq
    %v229 = vshrl.u32 %v228, 7
    %v230 = vsub.s32 0, %v229
    %v231 = vrot.slane %v67, %v230
    %v232 = vadd.f32 %v225, %v231
    %v233 = vmax.f32 %v232, 0.0
    %v234 = vld [vmem:[#allocation4] sm:$0xff]
    %v235 = vld [vmem:[#allocation4 + $0x8] sm:$0xff]
    %v236 = vld [vmem:[#allocation4 + $0x10] sm:$0xff]
    %v237 = vld [vmem:[#allocation4 + $0x18] sm:$0xff]
    %v238 = vld [vmem:[#allocation4 + $0x20] sm:$0xff]
    %v239 = vld [vmem:[#allocation4 + $0x28] sm:$0xff]
    %v240 = vld [vmem:[#allocation4 + $0x30] sm:$0xff]
    %v241 = vld [vmem:[#allocation4 + $0x38] sm:$0xff]
    %v242 = vld [vmem:[#allocation4 + $0x40] sm:$0xff]
    %v243 = vld [vmem:[#allocation4 + $0x48] sm:$0xff]
    %v244 = vld [vmem:[#allocation4 + $0x50] sm:$0xff]
    %v245 = vld [vmem:[#allocation4 + $0x58] sm:$0xff]
    %v246 = vld [vmem:[#allocation4 + $0x60] sm:$0xff]
    %v247 = vld [vmem:[#allocation4 + $0x68] sm:$0xff]
    %v248 = vld [vmem:[#allocation4 + $0x70] sm:$0xff]
    %v249 = vld [vmem:[#allocation4 + $0x78] sm:$0xff]
    %v250 = vlaneseq
    %v251 = vshrl.u32 %v250, 7
    %v252 = vsub.s32 0, %v251
    %v253 = vrot.slane %v68, %v252
    %254 = vmatprep.subr.mxu0 0.0
    %255 = vmatpush1.msra.mxu0 %v234
    %256 = vmatprep.subr.mxu0 0.0
    %257 = vmatpush1.msra.mxu0 %v235
    %258 = vmatprep.subr.mxu0 0.0
    %259 = vmatpush1.msra.mxu0 %v236
    %260 = vmatprep.subr.mxu0 0.0
    %261 = vmatpush1.msra.mxu0 %v237
    %262 = vmatprep.subr.mxu0 0.0
    %263 = vmatpush1.msra.mxu0 %v238
    %264 = vmatprep.subr.mxu0 0.0
    %265 = vmatpush1.msra.mxu0 %v239
    %266 = vmatprep.subr.mxu0 0.0
    %267 = vmatpush1.msra.mxu0 %v240
    %268 = vmatprep.subr.mxu0 0.0
    %269 = vmatpush1.msra.mxu0 %v241
    %270 = vmatprep.subr.mxu0 0.0
    %271 = vmatpush1.msra.mxu0 %v242
    %272 = vmatprep.subr.mxu0 0.0
    %273 = vmatpush1.msra.mxu0 %v243
    %274 = vmatprep.subr.mxu0 0.0
    %275 = vmatpush1.msra.mxu0 %v244
    %276 = vmatprep.subr.mxu0 0.0
    %277 = vmatpush1.msra.mxu0 %v245
    %278 = vmatprep.subr.mxu0 0.0
    %279 = vmatpush1.msra.mxu0 %v246
    %280 = vmatprep.subr.mxu0 0.0
    %281 = vmatpush1.msra.mxu0 %v247
    %282 = vmatprep.subr.mxu0 0.0
    %283 = vmatpush1.msra.mxu0 %v248
    %284 = vmatprep.subr.mxu0 0.0
    %285 = vmatpush1.msra.mxu0 %v249
    %286 = vmatprep.subr.mxu0 0.0
    %287 = vmatpush1.msra.mxu0 0.0
    %288 = vmatprep.subr.mxu0 0.0
    %289 = vmatpush1.msra.mxu0 0.0
    %290 = vmatprep.subr.mxu0 0.0
    %291 = vmatpush1.msra.mxu0 0.0
    %292 = vmatprep.subr.mxu0 0.0
    %293 = vmatpush1.msra.mxu0 0.0
    %294 = vmatprep.subr.mxu0 0.0
    %295 = vmatpush1.msra.mxu0 0.0
    %296 = vmatprep.subr.mxu0 0.0
    %297 = vmatpush1.msra.mxu0 0.0
    %298 = vmatprep.subr.mxu0 0.0
    %299 = vmatpush1.msra.mxu0 0.0
    %300 = vmatprep.subr.mxu0 0.0
    %301 = vmatpush1.msra.mxu0 0.0
    %302 = vmatprep.subr.mxu0 0.0
    %303 = vmatpush1.msra.mxu0 0.0
    %304 = vmatprep.subr.mxu0 0.0
    %305 = vmatpush1.msra.mxu0 0.0
    %306 = vmatprep.subr.mxu0 0.0
    %307 = vmatpush1.msra.mxu0 0.0
    %308 = vmatprep.subr.mxu0 0.0
    %309 = vmatpush1.msra.mxu0 0.0
    %310 = vmatprep.subr.mxu0 0.0
    %311 = vmatpush1.msra.mxu0 0.0
    %312 = vmatprep.subr.mxu0 0.0
    %313 = vmatpush1.msra.mxu0 0.0
    %314 = vmatprep.subr.mxu0 0.0
    %315 = vmatpush1.msra.mxu0 0.0
    %316 = vmatprep.subr.mxu0 0.0
    %317 = vmatpush1.msra.mxu0 0.0
    %318 = vmatprep.mubr.f32.mxu0 0.0
    %319 = vmatmul.mubr.f32.gmra.mrb[0].mxu0 %v233
    %v320 = vpop.f32.mrb[0].mxu0
    %v321 = vadd.f32 %v253, %v320
    %v322 = vpop.f32.mrb[0].mxu0
    %323 = vdwg.mxu0
    %v324 = vmax.f32 %v321, 0.0
    %v325 = vld [vmem:[#allocation6] sm:$0xff]
    %v326 = vld [vmem:[#allocation6 + $0x8] sm:$0xff]
    %v327 = vld [vmem:[#allocation6 + $0x10] sm:$0xff]
    %v328 = vld [vmem:[#allocation6 + $0x18] sm:$0xff]
    %v329 = vld [vmem:[#allocation6 + $0x20] sm:$0xff]
    %v330 = vld [vmem:[#allocation6 + $0x28] sm:$0xff]
    %v331 = vld [vmem:[#allocation6 + $0x30] sm:$0xff]
    %v332 = vld [vmem:[#allocation6 + $0x38] sm:$0xff]
    %v333 = vld [vmem:[#allocation6 + $0x40] sm:$0xff]
    %v334 = vld [vmem:[#allocation6 + $0x48] sm:$0xff]
    %v335 = vld [vmem:[#allocation6 + $0x50] sm:$0xff]
    %v336 = vld [vmem:[#allocation6 + $0x58] sm:$0xff]
    %v337 = vld [vmem:[#allocation6 + $0x60] sm:$0xff]
    %v338 = vld [vmem:[#allocation6 + $0x68] sm:$0xff]
    %v339 = vld [vmem:[#allocation6 + $0x70] sm:$0xff]
    %v340 = vld [vmem:[#allocation6 + $0x78] sm:$0xff]
    %v341 = vlaneseq
    %v342 = vshrl.u32 %v341, 7
    %v343 = vsub.s32 0, %v342
    %v344 = vrot.slane %v69, %v343
    %345 = vmatprep.subr.mxu0 0.0
    %346 = vmatpush1.msra.mxu0 %v325
    %347 = vmatprep.subr.mxu0 0.0
    %348 = vmatpush1.msra.mxu0 %v326
    %349 = vmatprep.subr.mxu0 0.0
    %350 = vmatpush1.msra.mxu0 %v327
    %351 = vmatprep.subr.mxu0 0.0
    %352 = vmatpush1.msra.mxu0 %v328
    %353 = vmatprep.subr.mxu0 0.0
    %354 = vmatpush1.msra.mxu0 %v329
    %355 = vmatprep.subr.mxu0 0.0
    %356 = vmatpush1.msra.mxu0 %v330
    %357 = vmatprep.subr.mxu0 0.0
    %358 = vmatpush1.msra.mxu0 %v331
    %359 = vmatprep.subr.mxu0 0.0
    %360 = vmatpush1.msra.mxu0 %v332
    %361 = vmatprep.subr.mxu0 0.0
    %362 = vmatpush1.msra.mxu0 %v333
    %363 = vmatprep.subr.mxu0 0.0
    %364 = vmatpush1.msra.mxu0 %v334
    %365 = vmatprep.subr.mxu0 0.0
    %366 = vmatpush1.msra.mxu0 %v335
    %367 = vmatprep.subr.mxu0 0.0
    %368 = vmatpush1.msra.mxu0 %v336
    %369 = vmatprep.subr.mxu0 0.0
    %370 = vmatpush1.msra.mxu0 %v337
    %371 = vmatprep.subr.mxu0 0.0
    %372 = vmatpush1.msra.mxu0 %v338
    %373 = vmatprep.subr.mxu0 0.0
    %374 = vmatpush1.msra.mxu0 %v339
    %375 = vmatprep.subr.mxu0 0.0
    %376 = vmatpush1.msra.mxu0 %v340
    %377 = vmatprep.subr.mxu0 0.0
    %378 = vmatpush1.msra.mxu0 0.0
    %379 = vmatprep.subr.mxu0 0.0
    %380 = vmatpush1.msra.mxu0 0.0
    %381 = vmatprep.subr.mxu0 0.0
    %382 = vmatpush1.msra.mxu0 0.0
    %383 = vmatprep.subr.mxu0 0.0
    %384 = vmatpush1.msra.mxu0 0.0
    %385 = vmatprep.subr.mxu0 0.0
    %386 = vmatpush1.msra.mxu0 0.0
    %387 = vmatprep.subr.mxu0 0.0
    %388 = vmatpush1.msra.mxu0 0.0
    %389 = vmatprep.subr.mxu0 0.0
    %390 = vmatpush1.msra.mxu0 0.0
    %391 = vmatprep.subr.mxu0 0.0
    %392 = vmatpush1.msra.mxu0 0.0
    %393 = vmatprep.subr.mxu0 0.0
    %394 = vmatpush1.msra.mxu0 0.0
    %395 = vmatprep.subr.mxu0 0.0
    %396 = vmatpush1.msra.mxu0 0.0
    %397 = vmatprep.subr.mxu0 0.0
    %398 = vmatpush1.msra.mxu0 0.0
    %399 = vmatprep.subr.mxu0 0.0
    %400 = vmatpush1.msra.mxu0 0.0
    %401 = vmatprep.subr.mxu0 0.0
    %402 = vmatpush1.msra.mxu0 0.0
    %403 = vmatprep.subr.mxu0 0.0
    %404 = vmatpush1.msra.mxu0 0.0
    %405 = vmatprep.subr.mxu0 0.0
    %406 = vmatpush1.msra.mxu0 0.0
    %407 = vmatprep.subr.mxu0 0.0
    %408 = vmatpush1.msra.mxu0 0.0
    %409 = vmatprep.mubr.f32.mxu0 0.0
    %410 = vmatmul.mubr.f32.gmra.mrb[0].mxu0 %v324
    %v411 = vpop.f32.mrb[0].mxu0
    %v412 = vadd.f32 %v344, %v411
    %v413 = vpop.f32.mrb[0].mxu0
    %414 = vdwg.mxu0
    %v415 = vxor.u32 %v412, 2147483648
    %v416 = vmul.f32 %v415, 1.442695
    %v417 = vpow.pop %v416
    %v418 = vadd.f32 %v417, 1.0
    %v419 = vrcp.pop %v418
    %v420 = vmul.f32 1.0, %v419
    %421 = vst [vmem:[%s7] sm:$0xff] %v420
    // Predicated region
    $region42: #{qnetwork_constraint_forward.1} parent=1 // pred_check
      _
    $region43: #{qnetwork_constraint_forward.1} parent=1 // pred_check_branch
      %423 = sbr.rel (0) target = $region45
    $region44: #{qnetwork_constraint_forward.1} parent=1 // pred_region
      _
    $region45: #{qnetwork_constraint_forward.1} parent=1 // pred_fallthru
      _
    // Predicated region
    $region46: #{qnetwork_constraint_forward.1} parent=1 // pred_check
      _
    $region47: #{qnetwork_constraint_forward.1} parent=1 // pred_check_branch
      %425 = sbr.rel (0) target = $region49
    $region48: #{qnetwork_constraint_forward.1} parent=1 // pred_region
      _
    $region49: #{qnetwork_constraint_forward.1} parent=1 // pred_fallthru
      _
    %426 = vsyncpa [#allocation3], 1
    %427 = vsyncpa [#allocation5], 1

</llo_original>
